<compile_context>
chip_gen: v6e
topology: v6e:2x2x1
jax: 0.10.0
libtpu: 0.0.40
codegen_flags: <defaults>
</compile_context>

<pallas_src>
import functools

import jax
import jax.numpy as jnp
from jax.experimental import pallas as pl
from jax.experimental.pallas import tpu as pltpu


def _default_vmem_limit_bytes():
    """Generation-aware scoped-VMEM limit (bytes)."""
    try:
        cap = int(pltpu.get_tpu_info().vmem_capacity_bytes)
    except Exception:
        cap = 64 * 1024 * 1024          # v7x per-TC VMEM; safe lower bound
    # ~3/4 of physical, capped at 96 MiB: v5e/v6e -> 96 MiB, v7x -> 48 MiB.
    return int(min(cap * 3 // 4, 96 * 1024 * 1024))


def _choose_tiles(N, C, HW, itemsize, vmem_limit, target_block_bytes):
    """Return (mode, tile_n, tile_hw), mode in {"full_hw", "tiled_hw"}.

    Row tiles are chosen so that no block is ever ragged or padded:
    tile_n == N (full extent) or tile_n is a multiple of 8 that divides N and
    keeps tile_n*C sublane-aligned for x's dtype.
    """
    sub = {4: 8, 2: 16, 1: 32}.get(itemsize, 8)        # sublane packing of x
    bytes_per_n = C * HW * itemsize                    # one batch row, full HW
    per_block = max(int(vmem_limit * 0.4), 1 << 20)    # x is double-buffered
    target = min(target_block_bytes, per_block)

    def tn_valid(tn):
        if tn <= 0 or N % tn != 0:
            return False
        if tn == N:
            return True                                 # full-extent blocks
        return tn % 8 == 0 and (tn * C) % sub == 0

    cands = sorted({tn for tn in range(8, N, 8) if tn_valid(tn)} | {N})

    # ---- Path A: one block spans the full HW extent (no HW grid axis). -----
    fitting = [tn for tn in cands if tn * bytes_per_n <= per_block]
    if fitting:
        under = [tn for tn in fitting if tn * bytes_per_n <= target] or [fitting[0]]
        # Keep >=2 grid steps on the parallel axis (v7x megacore) as long as
        # the block stays >= ~2 MiB.
        multi = [tn for tn in under if N // tn >= 2 and tn * bytes_per_n >= (2 << 20)]
        tn = max(multi) if multi else max(under)
        return "full_hw", tn, HW

    # ---- Path B: stream HW in lane-dense chunks that divide HW exactly. ----
    if HW % 128 == 0:
        tn = cands[0]                                   # smallest valid row tile
        max_thw = max(128, per_block // max(tn * C * itemsize, 1))
        thw, d = 128, 128
        while d <= min(max_thw, HW):
            if HW % d == 0:
                thw = d
            d += 128
        if thw < HW:
            return "tiled_hw", tn, thw

    # Fallback: stream the full (non-128-divisible) HW with the smallest row
    # tile; still no padding and no extra HBM traffic.
    # TODO(synk): in-kernel lane masking for huge HW that is not 128-divisible.
    return "full_hw", cands[0], HW


def _attention_kernel_full_hw(x_ref, g_ref, w_ref, b_ref, o_ref):
    # x_ref: (tR, HW) rows = (batch, channel) pairs; full spatial extent.
    # g_ref: (tN, tR) 0/1 group matrix; w_ref: (tR, K) row-tiled (W^T)/HW.
    pooled = jnp.sum(x_ref[...], axis=-1, keepdims=True, dtype=jnp.float32)   # (tR, 1)
    logits = jnp.dot(g_ref[...], pooled * w_ref[...],
                     preferred_element_type=jnp.float32) + b_ref[...]          # (tN, K)
    o_ref[...] = jax.nn.sigmoid(logits).astype(o_ref.dtype)


def _attention_kernel_tiled_hw(x_ref, g_ref, w_ref, b_ref, o_ref, acc_ref, *,
                               lane_chunks):
    # grid = (row tiles [parallel], HW tiles [arbitrary, last]).
    hw = pl.program_id(1)

    @pl.when(hw == 0)
    def _():
        acc_ref[...] = jnp.zeros_like(acc_ref)

    # Defer the cross-lane reduce: per-step element-wise VPU adds into (tR, 128).
    xb = x_ref[...]                                     # (tR, tHW)
    acc = acc_ref[...]
    for s in range(lane_chunks):
        acc = acc + xb[:, s * 128:(s + 1) * 128].astype(jnp.float32)
    acc_ref[...] = acc

    @pl.when(hw == pl.num_programs(1) - 1)
    def _():
        pooled = jnp.sum(acc_ref[...], axis=-1, keepdims=True)               # (tR, 1)
        logits = jnp.dot(g_ref[...], pooled * w_ref[...],
                         preferred_element_type=jnp.float32) + b_ref[...]
        o_ref[...] = jax.nn.sigmoid(logits).astype(o_ref.dtype)


def attention_forward(x_nchw, weight_kc11, bias_k, *,
                      vmem_limit_bytes=None,
                      target_block_bytes=8 * 1024 * 1024,
                      _tiles=None):
    """x_nchw: (N, C, H, W); weight_kc11: (K, C, 1, 1); bias_k: (K,) -> (N, K)."""
    N, C, H, W = x_nchw.shape
    K = weight_kc11.shape[0]
    HW = H * W
    itemsize = jnp.dtype(x_nchw.dtype).itemsize

    if vmem_limit_bytes is None:
        vmem_limit_bytes = _default_vmem_limit_bytes()

    mode, tn, thw = (_tiles if _tiles is not None else
                     _choose_tiles(N, C, HW, itemsize, vmem_limit_bytes,
                                   target_block_bytes))
    tr = tn * C

    # Free, contiguous reshape: (N, C, H, W) -> (N*C, HW).  No padded copy.
    x_rows = x_nchw.reshape(N * C, HW)

    # Tiny f32 parameters.  1/HW folded into the row-tiled weight.
    w_ck = weight_kc11.reshape(K, C).T.astype(jnp.float32) / float(HW)        # (C, K)
    w_rows = jnp.tile(w_ck, (tn, 1))                                          # (tR, K)
    g = (jnp.arange(tr) // C == jnp.arange(tn)[:, None]).astype(jnp.float32)  # (tN, tR)
    b_1k = bias_k.reshape(1, K).astype(jnp.float32)                           # (1, K)

    if mode == "full_hw":
        grid = (N // tn,)
        kernel = _attention_kernel_full_hw
        in_specs = [
            pl.BlockSpec((tr, HW), lambda i: (i, 0)),
            pl.BlockSpec((tn, tr), lambda i: (0, 0)),
            pl.BlockSpec((tr, K), lambda i: (0, 0)),
            pl.BlockSpec((1, K), lambda i: (0, 0)),
        ]
        out_specs = pl.BlockSpec((tn, K), lambda i: (i, 0))
        scratch_shapes = ()
        dim_sem = ("parallel",)
    else:  # "tiled_hw"
        grid = (N // tn, HW // thw)
        kernel = functools.partial(_attention_kernel_tiled_hw,
                                   lane_chunks=thw // 128)
        in_specs = [
            pl.BlockSpec((tr, thw), lambda i, j: (i, j)),
            pl.BlockSpec((tn, tr), lambda i, j: (0, 0)),
            pl.BlockSpec((tr, K), lambda i, j: (0, 0)),
            pl.BlockSpec((1, K), lambda i, j: (0, 0)),
        ]
        # Output block index independent of the HW axis -> written once per
        # row tile (accumulator stays resident across the reduction axis).
        out_specs = pl.BlockSpec((tn, K), lambda i, j: (i, 0))
        scratch_shapes = (pltpu.VMEM((tr, 128), jnp.float32),)
        dim_sem = ("parallel", "arbitrary")

    out = pl.pallas_call(
        kernel,
        out_shape=jax.ShapeDtypeStruct((N, K), x_nchw.dtype),
        grid_spec=pltpu.PrefetchScalarGridSpec(
            num_scalar_prefetch=0,
            grid=grid,
            in_specs=in_specs,
            out_specs=out_specs,
            scratch_shapes=scratch_shapes,
        ),
        compiler_params=pltpu.CompilerParams(
            dimension_semantics=dim_sem,
            vmem_limit_bytes=int(vmem_limit_bytes),
        ),
        cost_estimate=pl.CostEstimate(
            flops=int(N * C * HW + 2 * N * C * K),
            transcendentals=int(N * K),
            bytes_accessed=int(N * C * HW * itemsize + N * K * itemsize),
        ),
    )(x_rows, g, w_rows, b_1k)
    return out


def attention_reference(x_nchw, weight_kc11, bias_k):
    """Pure-JAX reference mirroring the PyTorch forward."""
    pooled = jnp.mean(x_nchw.astype(jnp.float32), axis=(2, 3))            # (N, C)
    K, C = weight_kc11.shape[0], weight_kc11.shape[1]
    logits = pooled @ weight_kc11.reshape(K, C).T.astype(jnp.float32)
    logits = logits + bias_k.astype(jnp.float32)
    return jax.nn.sigmoid(logits).astype(x_nchw.dtype)


if __name__ == "__main__":
    # --- Test 1: module-consistent small shapes, automatic tile selection. --
    N, C, H, W, K = 2, 4, 16, 16, 8
    kx, kw, kb = jax.random.split(jax.random.PRNGKey(0), 3)
    x = jax.random.normal(kx, (N, C, H, W), dtype=jnp.float32)
    weight = jax.random.normal(kw, (K, C, 1, 1), dtype=jnp.float32) * 0.1
    bias = jax.random.normal(kb, (K,), dtype=jnp.float32) * 0.1

    out = jax.block_until_ready(attention_forward(x, weight, bias))
    ref = attention_reference(x, weight, bias)
    assert out.shape == (N, K)
    assert jnp.allclose(out, ref, atol=1e-5, rtol=1e-5), "mismatch (full_hw auto)"

    # --- Test 2: exercise the HW-streaming path (forced lane-dense tiling). -
    N2, C2, H2, W2, K2 = 8, 4, 32, 32, 8
    k1, k2, k3 = jax.random.split(jax.random.PRNGKey(1), 3)
    x2 = jax.random.normal(k1, (N2, C2, H2, W2), dtype=jnp.float32)
    w2 = jax.random.normal(k2, (K2, C2, 1, 1), dtype=jnp.float32) * 0.1
    b2 = jax.random.normal(k3, (K2,), dtype=jnp.float32) * 0.1
    out2 = jax.block_until_ready(
        attention_forward(x2, w2, b2, _tiles=("tiled_hw", 8, 256)))
    assert jnp.allclose(out2, attention_reference(x2, w2, b2),
                        atol=1e-5, rtol=1e-5), "mismatch (tiled_hw)"

    # --- Test 3: multiple row blocks on the parallel grid axis. -------------
    N3, C3, H3, W3, K3 = 16, 8, 16, 16, 8
    k1, k2, k3 = jax.random.split(jax.random.PRNGKey(2), 3)
    x3 = jax.random.normal(k1, (N3, C3, H3, W3), dtype=jnp.float32)
    w3 = jax.random.normal(k2, (K3, C3, 1, 1), dtype=jnp.float32) * 0.1
    b3 = jax.random.normal(k3, (K3,), dtype=jnp.float32) * 0.1
    out3 = jax.block_until_ready(
        attention_forward(x3, w3, b3, _tiles=("full_hw", 8, H3 * W3)))
    assert jnp.allclose(out3, attention_reference(x3, w3, b3),
                        atol=1e-5, rtol=1e-5), "mismatch (full_hw multi-block)"

    print("KERNEL_OK")
</pallas_src>

<mosaic_0001>
module attributes {stable_mosaic.version = 11 : i64} {
  func.func @_attention_kernel_full_hw(%arg0: i32, %arg1: memref<8x256xf32, #tpu.memory_space<vmem>>, %arg2: memref<2x8xf32, #tpu.memory_space<vmem>>, %arg3: memref<8x8xf32, #tpu.memory_space<vmem>>, %arg4: memref<1x8xf32, #tpu.memory_space<vmem>>, %arg5: memref<2x8xf32, #tpu.memory_space<vmem>>) attributes {dimension_semantics = [#tpu.dimension_semantics<parallel>], iteration_bounds = array<i64: 1>, scalar_prefetch = 0 : i64, scratch_operands = 0 : i64, tpu.core_type = #tpu.core_type<tc>, window_params = [{transform_indices = @transform_0, window_bounds = array<i64: 8, 256>}, {pipeline_mode = #tpu.pipeline_mode<synchronous>, transform_indices = @transform_1, window_bounds = array<i64: 2, 8>}, {pipeline_mode = #tpu.pipeline_mode<synchronous>, transform_indices = @transform_2, window_bounds = array<i64: 8, 8>}, {pipeline_mode = #tpu.pipeline_mode<synchronous>, transform_indices = @transform_3, window_bounds = array<i64: 1, 8>}, {transform_indices = @transform_4, window_bounds = array<i64: 2, 8>}]} {
    %c0 = arith.constant 0 : index
    %c0_0 = arith.constant 0 : index
    %0 = vector.load %arg1[%c0, %c0_0] : memref<8x256xf32, #tpu.memory_space<vmem>>, vector<8x256xf32>
    %cst = arith.constant dense<0.000000e+00> : vector<8xf32>
    %1 = vector.multi_reduction <add>, %0, %cst [1] : vector<8x256xf32> to vector<8xf32>
    %2 = vector.shape_cast %1 : vector<8xf32> to vector<8x1xf32>
    %c0_1 = arith.constant 0 : index
    %c0_2 = arith.constant 0 : index
    %3 = vector.load %arg2[%c0_1, %c0_2] : memref<2x8xf32, #tpu.memory_space<vmem>>, vector<2x8xf32>
    %c0_3 = arith.constant 0 : index
    %c0_4 = arith.constant 0 : index
    %4 = vector.load %arg3[%c0_3, %c0_4] : memref<8x8xf32, #tpu.memory_space<vmem>>, vector<8x8xf32>
    %5 = vector.broadcast %2 : vector<8x1xf32> to vector<8x8xf32>
    %6 = arith.mulf %5, %4 : vector<8x8xf32>
    %cst_5 = arith.constant dense<0.000000e+00> : vector<2x8xf32>
    %7 = tpu.matmul %3, %6, %cst_5 {dimension_numbers = #tpu.dot_dimension_numbers<[1], [0], [0], [1], [0, 0, 1, 1], [], []>} : vector<2x8xf32>, vector<8x8xf32>, vector<2x8xf32> -> vector<2x8xf32>
    %c0_6 = arith.constant 0 : index
    %c0_7 = arith.constant 0 : index
    %8 = vector.load %arg4[%c0_6, %c0_7] : memref<1x8xf32, #tpu.memory_space<vmem>>, vector<1x8xf32>
    %9 = vector.broadcast %8 : vector<1x8xf32> to vector<2x8xf32>
    %10 = arith.addf %7, %9 : vector<2x8xf32>
    %11 = arith.negf %10 : vector<2x8xf32>
    %12 = math.exp %11 : vector<2x8xf32>
    %cst_8 = arith.constant 1.000000e+00 : f32
    %13 = vector.broadcast %cst_8 : f32 to vector<2x8xf32>
    %14 = arith.addf %13, %12 : vector<2x8xf32>
    %15 = arith.divf %13, %14 : vector<2x8xf32>
    %c0_9 = arith.constant 0 : index
    %c0_10 = arith.constant 0 : index
    %16 = vector.load %arg5[%c0_9, %c0_10] : memref<2x8xf32, #tpu.memory_space<vmem>>, vector<2x8xf32>
    tpu.vector_store %arg5[%c0_9, %c0_10], %15 {strides = array<i32>} : memref<2x8xf32, #tpu.memory_space<vmem>>, vector<2x8xf32>,
    return
  }
  func.func @transform_0(%arg0: i32) -> (i32, i32) {
    %c0_i32 = arith.constant 0 : i32
    %c0_i32_0 = arith.constant 0 : i32
    return %arg0, %c0_i32 : i32, i32
  }
  func.func @transform_1(%arg0: i32) -> (i32, i32) {
    %c0_i32 = arith.constant 0 : i32
    %c0_i32_0 = arith.constant 0 : i32
    %c0_i32_1 = arith.constant 0 : i32
    return %c0_i32, %c0_i32_0 : i32, i32
  }
  func.func @transform_2(%arg0: i32) -> (i32, i32) {
    %c0_i32 = arith.constant 0 : i32
    %c0_i32_0 = arith.constant 0 : i32
    %c0_i32_1 = arith.constant 0 : i32
    return %c0_i32, %c0_i32_0 : i32, i32
  }
  func.func @transform_3(%arg0: i32) -> (i32, i32) {
    %c0_i32 = arith.constant 0 : i32
    %c0_i32_0 = arith.constant 0 : i32
    %c0_i32_1 = arith.constant 0 : i32
    return %c0_i32, %c0_i32_0 : i32, i32
  }
  func.func @transform_4(%arg0: i32) -> (i32, i32) {
    %c0_i32 = arith.constant 0 : i32
    %c0_i32_0 = arith.constant 0 : i32
    return %arg0, %c0_i32 : i32, i32
  }
}

</mosaic_0001>

<llo_original>
// kernel: tpu_custom_call.1
$region0: #{tpu_custom_call.1}
  #allocation0 [shape = 'u32[]', space=smem, size = 0x4, offset = 0x4, fixed_abs, tag = 'smem constant byte address 0x4 - core index']
  #allocation1 [shape = 'u32[144,128]{1,0:T(1,128)}', space=vmem, size = 0x12000, scoped, tag = 'internal scratch']
  %s0 = inlined_call_operand.hbm [shape: f32[8,256], index: 0, kind: input, shape index: {}]
  %s1 = inlined_call_operand.hbm [shape: f32[2,8], index: 1, kind: input, shape index: {}]
  %s2 = inlined_call_operand.hbm [shape: f32[8,8], index: 2, kind: input, shape index: {}]
  %s3 = inlined_call_operand.vmem [shape: f32[1,8], index: 3, kind: input, shape index: {}]
  %s4 = inlined_call_operand.hbm [shape: f32[2,8], index: 4, kind: output, shape index: {}]
  %s5 = sld [smem:[#allocation0]]
  $region38: #{tpu_custom_call.1} parent=0
    _
  %s7 = ssub.s32 1, %s5
  %s8 = scalar_select 0, %s7, %s5
  $region1: #{tpu_custom_call.1} parent=0
    #allocation2 [shape = 'u8[8192]{0}', space=vmem, size = 0x2000, scoped, tag = 'input window, operand 0, single buffered']
    #allocation3 [shape = 's32[1]{0}', space=sflag, size = 0x4, scoped, tag = 'scoped memory for tpu_custom_call.1']
    #allocation4 [shape = 's32[1]{0}', space=sflag, size = 0x4, scoped, tag = 'scoped memory for tpu_custom_call.1']
    #allocation5 [shape = 'u8[1024]{0}', space=vmem, size = 0x400, scoped, tag = 'input window, operand 1, single buffered']
    #allocation6 [shape = 's32[1]{0}', space=sflag, size = 0x4, scoped, tag = 'scoped memory for tpu_custom_call.1']
    #allocation7 [shape = 'u8[4096]{0}', space=vmem, size = 0x1000, scoped, tag = 'input window, operand 2, single buffered']
    #allocation8 [shape = 'u8[1024]{0}', space=vmem, size = 0x400, scoped, tag = 'output window, operand 0, single buffered']
    %9 = vsyncpa [#allocation3], 0
    %10 = vsyncpa [#allocation6], 0
    %11 = vsyncpa [#allocation4], 0
    // Predicated region
    $region2: #{tpu_custom_call.1} parent=1 // pred_check
      _
    $region3: #{tpu_custom_call.1} parent=1 // pred_check_branch
      %13 = sbr.rel (0) target = $region5
    $region4: #{tpu_custom_call.1} parent=1 // pred_region
      %s15 = ssub.s32 256, 256
      %16 = vsyncadd [#allocation3], %s15
      %s18 = sshll.u32 [#allocation2], 4
      %s19 = int_to_ptr.vmem [resolvable:$true] %s18
      %21 = dma.hbm_to_vmem [thread:$0]  %s0, 256, %s19, [#allocation3]
    $region5: #{tpu_custom_call.1} parent=1 // pred_fallthru
      _
    // Predicated region
    $region6: #{tpu_custom_call.1} parent=1 // pred_check
      _
    $region7: #{tpu_custom_call.1} parent=1 // pred_check_branch
      %23 = sbr.rel (0) target = $region9
    $region8: #{tpu_custom_call.1} parent=1 // pred_region
      %s25 = ssub.s32 32, 32
      %26 = vsyncadd [#allocation6], %s25
      %s28 = sshll.u32 [#allocation5], 4
      %s29 = int_to_ptr.vmem [resolvable:$true] %s28
      %31 = dma.hbm_to_vmem [thread:$0]  %s1, 32, %s29, [#allocation6]
    $region9: #{tpu_custom_call.1} parent=1 // pred_fallthru
      _
    // Predicated region
    $region10: #{tpu_custom_call.1} parent=1 // pred_check
      _
    $region11: #{tpu_custom_call.1} parent=1 // pred_check_branch
      %33 = sbr.rel (0) target = $region13
    $region12: #{tpu_custom_call.1} parent=1 // pred_region
      %s35 = ssub.s32 128, 128
      %36 = vsyncadd [#allocation6], %s35
      %s38 = sshll.u32 [#allocation7], 4
      %s39 = int_to_ptr.vmem [resolvable:$true] %s38
      %41 = dma.hbm_to_vmem [thread:$0]  %s2, 128, %s39, [#allocation6]
    $region13: #{tpu_custom_call.1} parent=1 // pred_fallthru
      _
    // Predicated region
    $region14: #{tpu_custom_call.1} parent=1 // pred_check
      _
    $region15: #{tpu_custom_call.1} parent=1 // pred_check_branch
      %43 = sbr.rel (0) target = $region17
    $region16: #{tpu_custom_call.1} parent=1 // pred_region
      _
    $region17: #{tpu_custom_call.1} parent=1 // pred_fallthru
      _
    // Predicated region
    $region18: #{tpu_custom_call.1} parent=1 // pred_check
      _
    $region19: #{tpu_custom_call.1} parent=1 // pred_check_branch
      %45 = sbr.rel (0) target = $region21
    $region20: #{tpu_custom_call.1} parent=1 // pred_region
      %46 = dma.done [#allocation3], 256
    $region21: #{tpu_custom_call.1} parent=1 // pred_fallthru
      _
    // Predicated region
    $region22: #{tpu_custom_call.1} parent=1 // pred_check
      _
    $region23: #{tpu_custom_call.1} parent=1 // pred_check_branch
      %48 = sbr.rel (0) target = $region25
    $region24: #{tpu_custom_call.1} parent=1 // pred_region
      %49 = dma.done [#allocation6], 32
    $region25: #{tpu_custom_call.1} parent=1 // pred_fallthru
      _
    // Predicated region
    $region26: #{tpu_custom_call.1} parent=1 // pred_check
      _
    $region27: #{tpu_custom_call.1} parent=1 // pred_check_branch
      %51 = sbr.rel (0) target = $region29
    $region28: #{tpu_custom_call.1} parent=1 // pred_region
      %52 = dma.done [#allocation6], 128
    $region29: #{tpu_custom_call.1} parent=1 // pred_fallthru
      _
    %v53 = vld [vmem:[#allocation2] sm:$0xff]
    %v54 = vld [vmem:[#allocation2 + $0x8] sm:$0xff]
    %v55 = vadd.f32 %v53, %v54
    %56 = vadd.xlane.f32.xlu0 %v55
    %v57 = vpop.xlane.xlu0 %56
    %v58 = vld [vmem:[#allocation5] sm:$0x3]
    %v59 = vld [vmem:[#allocation7] sm:$0xff]
    %v60 = vmul.f32 %v57, %v59
    %v61 = vld [vmem:[%s3] sm:$0x1]
    %v63 = vlaneseq
    %v64 = vshrl.u32 %v63, 7
    %v65 = vsub.s32 0, %v64
    %v66 = vrot.slane %v61, %v65
    %vm68 = vcmask 64512
    %v70 = vsel %vm68, %v58, 0
    %72 = vmatprep.subr.mxu0 0.0
    %73 = vmatpush1.msra.mxu0 0.0
    %74 = vmatprep.subr.mxu0 0.0
    %75 = vmatpush1.msra.mxu0 0.0
    %76 = vmatprep.subr.mxu0 0.0
    %77 = vmatpush1.msra.mxu0 0.0
    %78 = vmatprep.subr.mxu0 0.0
    %79 = vmatpush1.msra.mxu0 0.0
    %80 = vmatprep.subr.mxu0 0.0
    %81 = vmatpush1.msra.mxu0 0.0
    %82 = vmatprep.subr.mxu0 0.0
    %83 = vmatpush1.msra.mxu0 0.0
    %84 = vmatprep.subr.mxu0 0.0
    %85 = vmatpush1.msra.mxu0 0.0
    %86 = vmatprep.subr.mxu0 0.0
    %87 = vmatpush1.msra.mxu0 0.0
    %88 = vmatprep.subr.mxu0 0.0
    %89 = vmatpush1.msra.mxu0 0.0
    %90 = vmatprep.subr.mxu0 0.0
    %91 = vmatpush1.msra.mxu0 0.0
    %92 = vmatprep.subr.mxu0 0.0
    %93 = vmatpush1.msra.mxu0 0.0
    %94 = vmatprep.subr.mxu0 0.0
    %95 = vmatpush1.msra.mxu0 0.0
    %96 = vmatprep.subr.mxu0 0.0
    %97 = vmatpush1.msra.mxu0 0.0
    %98 = vmatprep.subr.mxu0 0.0
    %99 = vmatpush1.msra.mxu0 0.0
    %100 = vmatprep.subr.mxu0 0.0
    %101 = vmatpush1.msra.mxu0 0.0
    %102 = vmatprep.subr.mxu0 0.0
    %103 = vmatpush1.msra.mxu0 %v60
    %104 = vmatprep.subr.mxu0 0.0
    %105 = vmatpush2.msra.mxu0 0.0
    %106 = vmatprep.subr.mxu0 0.0
    %107 = vmatpush2.msra.mxu0 0.0
    %108 = vmatprep.subr.mxu0 0.0
    %109 = vmatpush2.msra.mxu0 0.0
    %110 = vmatprep.subr.mxu0 0.0
    %111 = vmatpush2.msra.mxu0 0.0
    %112 = vmatprep.subr.mxu0 0.0
    %113 = vmatpush2.msra.mxu0 0.0
    %114 = vmatprep.subr.mxu0 0.0
    %115 = vmatpush2.msra.mxu0 0.0
    %116 = vmatprep.subr.mxu0 0.0
    %117 = vmatpush2.msra.mxu0 0.0
    %118 = vmatprep.subr.mxu0 0.0
    %119 = vmatpush2.msra.mxu0 0.0
    %120 = vmatprep.subr.mxu0 0.0
    %121 = vmatpush2.msra.mxu0 0.0
    %122 = vmatprep.subr.mxu0 0.0
    %123 = vmatpush2.msra.mxu0 0.0
    %124 = vmatprep.subr.mxu0 0.0
    %125 = vmatpush2.msra.mxu0 0.0
    %126 = vmatprep.subr.mxu0 0.0
    %127 = vmatpush2.msra.mxu0 0.0
    %128 = vmatprep.subr.mxu0 0.0
    %129 = vmatpush2.msra.mxu0 0.0
    %130 = vmatprep.subr.mxu0 0.0
    %131 = vmatpush2.msra.mxu0 0.0
    %132 = vmatprep.subr.mxu0 0.0
    %133 = vmatpush2.msra.mxu0 0.0
    %134 = vmatprep.subr.mxu0 0.0
    %135 = vmatpush2.msra.mxu0 0.0
    %136 = vmatprep.mubr.f32.mxu0 0.0
    %137 = vmatmul.mubr.f32.gmra.mxu0 %v70
    %v138 = vpop.f32.mrf.mxu0
    %v139 = vadd.f32 %v66, %v138
    %v140 = vpop.f32.mrf.mxu0
    %141 = vdwg.mxu0
    %v142 = vxor.u32 %v139, 2147483648
    %v143 = vmul.f32 %v142, 1.442695
    %v144 = vpow.pop %v143
    %v145 = vadd.f32 %v144, 1.0
    %v146 = vrcp.pop %v145
    %v147 = vmul.f32 1.0, %v146
    %vm148 = vcmask 58368
    %149 = vst.msk [vmem:[#allocation8] sm:$0x3] %vm148, %v147
    // Predicated region
    $region30: #{tpu_custom_call.1} parent=1 // pred_check
      _
    $region31: #{tpu_custom_call.1} parent=1 // pred_check_branch
      %151 = sbr.rel (0) target = $region33
    $region32: #{tpu_custom_call.1} parent=1 // pred_region
      %s153 = ssub.s32 32, 32
      %154 = vsyncadd [#allocation4], %s153
      %s156 = sshll.u32 [#allocation8], 4
      %s157 = int_to_ptr.vmem [resolvable:$true] %s156
      %159 = dma.vmem_to_hbm [thread:$0]  %s157, 32, %s4, [#allocation4]
    $region33: #{tpu_custom_call.1} parent=1 // pred_fallthru
      _
    // Predicated region
    $region34: #{tpu_custom_call.1} parent=1 // pred_check
      _
    $region35: #{tpu_custom_call.1} parent=1 // pred_check_branch
      %161 = sbr.rel (0) target = $region37
    $region36: #{tpu_custom_call.1} parent=1 // pred_region
      %162 = dma.done [#allocation4], 32
    $region37: #{tpu_custom_call.1} parent=1 // pred_fallthru
      _
    %163 = vsyncpa [#allocation3], 1
    %164 = vsyncpa [#allocation6], 1
    %165 = vsyncpa [#allocation4], 1

</llo_original>
